<compile_context>
chip_gen: v6e
topology: v6e:2x2x1
jax: 0.10.0
libtpu: 0.0.40
codegen_flags: <defaults>
</compile_context>

<pallas_src>
import jax
import jax.numpy as jnp
from jax import lax
from jax.experimental import pallas as pl
from jax.experimental.pallas import tpu as pltpu


def _round_up(n, m):
    return ((n + m - 1) // m) * m


def _make_ff_kernel(eps, matmul_dtype):
    def ff_kernel(x_ref, w1_ref, b1_ref, w2_ref, b2_ref, g_ref, beta_ref, o_ref):
        # f32 copy of the row tile for the residual / LayerNorm path.
        x = x_ref[...].astype(jnp.float32)
        # Matmul operand (bf16 when requested -> single-pass MXU on v5e/v6e).
        xm = x_ref[...].astype(matmul_dtype)

        # linear1 + ReLU  (MXU, f32 accumulation). dropout1: identity in eval mode.
        h = jnp.dot(xm, w1_ref[...], preferred_element_type=jnp.float32) + b1_ref[...]
        h = jnp.maximum(h, 0.0).astype(matmul_dtype)

        # linear2 + bias + residual, fused f32 epilogue. dropout2: identity in eval.
        out = x + jnp.dot(h, w2_ref[...], preferred_element_type=jnp.float32) + b2_ref[...]

        # LayerNorm over d_model (eps inside rsqrt, matches torch 1e-5).
        mean = jnp.mean(out, axis=-1, keepdims=True)           # XLU reduction
        centered = out - mean
        var = jnp.mean(centered * centered, axis=-1, keepdims=True)
        inv = lax.rsqrt(var + eps)                              # EUP slot
        o_ref[...] = (centered * inv * g_ref[...] + beta_ref[...]).astype(o_ref.dtype)

    return ff_kernel


def feed_forward_pallas(x, w1, b1, w2, b2, gamma, beta, *, eps=1e-5, tm=256,
                        matmul_dtype=jnp.float32):
    """x: (B, S, D). Returns (B, S, D).
    Weights: w1 (D,F), b1 (F,), w2 (F,D), b2 (D,), gamma/beta (D,).
    tm: row-tile size (tuned parameter); clamped / padded to handle any B*S.
    matmul_dtype: dtype used for the two MXU matmuls (f32 accumulation always)."""
    B, S, D = x.shape
    F = w1.shape[1]
    N = B * S

    # Tile sizing: large row tiles amortize the ~0.35us per-grid-step overhead and
    # fill the MXU M dimension. Clamp for tiny inputs, pad rows so any N works.
    tm = _round_up(max(tm, 8), 8)
    tm_eff = min(tm, _round_up(N, 8))
    n_pad = _round_up(N, tm_eff)
    grid = n_pad // tm_eff

    x2d = x.reshape(N, D)
    if n_pad != N:
        x2d = jnp.pad(x2d, ((0, n_pad - N), (0, 0)))

    # Weights in the matmul dtype (halves their VMEM/HBM footprint for bf16).
    w1c = w1.astype(matmul_dtype)
    w2c = w2.astype(matmul_dtype)
    b1_2d = b1.reshape(1, F).astype(jnp.float32)
    b2_2d = b2.reshape(1, D).astype(jnp.float32)
    g_2d = gamma.reshape(1, D).astype(jnp.float32)
    be_2d = beta.reshape(1, D).astype(jnp.float32)

    # Whole-array VMEM residency (loaded once, no per-step double buffering).
    vmem_whole = pl.BlockSpec(memory_space=pltpu.MemorySpace.VMEM)

    out2d = pl.pallas_call(
        _make_ff_kernel(eps, matmul_dtype),
        out_shape=jax.ShapeDtypeStruct((n_pad, D), x.dtype),
        grid_spec=pltpu.PrefetchScalarGridSpec(
            num_scalar_prefetch=0,
            grid=(grid,),
            in_specs=[
                pl.BlockSpec((tm_eff, D), lambda i: (i, 0)),  # x row tile (pipelined)
                vmem_whole,   # w1  (D, F)
                vmem_whole,   # b1  (1, F)
                vmem_whole,   # w2  (F, D)
                vmem_whole,   # b2  (1, D)
                vmem_whole,   # gamma (1, D)
                vmem_whole,   # beta  (1, D)
            ],
            out_specs=pl.BlockSpec((tm_eff, D), lambda i: (i, 0)),
        ),
        compiler_params=pltpu.CompilerParams(
            dimension_semantics=("parallel",),       # shardable across TCs (v7x)
            vmem_limit_bytes=32 * 1024 * 1024,       # sized for v7x 64MiB VMEM
        ),
    )(x2d, w1c, b1_2d, w2c, b2_2d, g_2d, be_2d)

    if n_pad != N:
        out2d = out2d[:N]
    return out2d.reshape(B, S, D)


def feed_forward_ref(x, w1, b1, w2, b2, gamma, beta, eps=1e-5):
    """Pure-JAX f32 reference matching the PyTorch forward (eval mode)."""
    h = jnp.maximum(x @ w1 + b1, 0.0)
    y = h @ w2 + b2
    out = x + y
    mean = jnp.mean(out, axis=-1, keepdims=True)
    var = jnp.mean((out - mean) ** 2, axis=-1, keepdims=True)
    return (out - mean) / jnp.sqrt(var + eps) * gamma + beta


if __name__ == "__main__":
    # Module defaults: d_model=64, dim_feedforward=512, layer_norm_eps=1e-5
    D, F = 64, 512

    key = jax.random.PRNGKey(0)
    kx, k1, k2, k3, k4, kx2, kx3 = jax.random.split(key, 7)

    # Deterministic synthetic parameters (shapes from the module's __init__).
    w1 = jax.random.normal(k1, (D, F), dtype=jnp.float32) * (1.0 / D ** 0.5)
    b1 = jax.random.normal(k2, (F,), dtype=jnp.float32) * 0.01
    w2 = jax.random.normal(k3, (F, D), dtype=jnp.float32) * (1.0 / F ** 0.5)
    b2 = jax.random.normal(k4, (D,), dtype=jnp.float32) * 0.01
    gamma = jnp.ones((D,), dtype=jnp.float32)
    beta = jnp.zeros((D,), dtype=jnp.float32)

    # 1) Small shape (module-default-like), f32 matmuls, tight tolerance.
    B, S = 2, 8
    x = jax.random.normal(kx, (B, S, D), dtype=jnp.float32)
    out = jax.block_until_ready(feed_forward_pallas(x, w1, b1, w2, b2, gamma, beta))
    ref = feed_forward_ref(x, w1, b1, w2, b2, gamma, beta)
    assert out.shape == (B, S, D)
    assert jnp.allclose(out, ref, atol=1e-4, rtol=1e-4), "f32 small-shape mismatch"

    # 2) Non-divisible row count exercises the padding path.
    Bp, Sp = 3, 5
    xp = jax.random.normal(kx2, (Bp, Sp, D), dtype=jnp.float32)
    outp = jax.block_until_ready(feed_forward_pallas(xp, w1, b1, w2, b2, gamma, beta))
    refp = feed_forward_ref(xp, w1, b1, w2, b2, gamma, beta)
    assert outp.shape == (Bp, Sp, D)
    assert jnp.allclose(outp, refp, atol=1e-4, rtol=1e-4), "padding-path mismatch"

    # 3) Multi-step grid with the full tm=256 tile, plus bf16-matmul variant.
    Bl, Sl = 4, 512                      # N = 2048 -> 8 grid steps at tm=256
    xl = jax.random.normal(kx3, (Bl, Sl, D), dtype=jnp.float32)
    outl = jax.block_until_ready(
        feed_forward_pallas(xl, w1, b1, w2, b2, gamma, beta, tm=256))
    refl = feed_forward_ref(xl, w1, b1, w2, b2, gamma, beta)
    assert jnp.allclose(outl, refl, atol=1e-4, rtol=1e-4), "f32 large-shape mismatch"

    outl_bf16 = jax.block_until_ready(
        feed_forward_pallas(xl, w1, b1, w2, b2, gamma, beta, tm=256,
                            matmul_dtype=jnp.bfloat16))
    assert jnp.allclose(outl_bf16, refl, atol=5e-2, rtol=5e-2), "bf16 variant mismatch"

    print("KERNEL_OK")
</pallas_src>

<mosaic_0001>
module attributes {stable_mosaic.version = 11 : i64} {
  func.func @ff_kernel(%arg0: i32, %arg1: memref<16x64xf32, #tpu.memory_space<vmem>>, %arg2: memref<64x512xf32, #tpu.memory_space<vmem>>, %arg3: memref<1x512xf32, #tpu.memory_space<vmem>>, %arg4: memref<512x64xf32, #tpu.memory_space<vmem>>, %arg5: memref<1x64xf32, #tpu.memory_space<vmem>>, %arg6: memref<1x64xf32, #tpu.memory_space<vmem>>, %arg7: memref<1x64xf32, #tpu.memory_space<vmem>>, %arg8: memref<16x64xf32, #tpu.memory_space<vmem>>) attributes {dimension_semantics = [#tpu.dimension_semantics<parallel>], iteration_bounds = array<i64: 1>, scalar_prefetch = 0 : i64, scratch_operands = 0 : i64, tpu.core_type = #tpu.core_type<tc>, window_params = [{transform_indices = @transform_0, window_bounds = array<i64: 16, 64>}, {pipeline_mode = #tpu.pipeline_mode<synchronous>, transform_indices = @transform_1, window_bounds = array<i64: 64, 512>}, {pipeline_mode = #tpu.pipeline_mode<synchronous>, transform_indices = @transform_2, window_bounds = array<i64: 1, 512>}, {pipeline_mode = #tpu.pipeline_mode<synchronous>, transform_indices = @transform_3, window_bounds = array<i64: 512, 64>}, {pipeline_mode = #tpu.pipeline_mode<synchronous>, transform_indices = @transform_4, window_bounds = array<i64: 1, 64>}, {pipeline_mode = #tpu.pipeline_mode<synchronous>, transform_indices = @transform_5, window_bounds = array<i64: 1, 64>}, {pipeline_mode = #tpu.pipeline_mode<synchronous>, transform_indices = @transform_6, window_bounds = array<i64: 1, 64>}, {transform_indices = @transform_7, window_bounds = array<i64: 16, 64>}]} {
    %c0 = arith.constant 0 : index
    %c0_0 = arith.constant 0 : index
    %0 = vector.load %arg1[%c0, %c0_0] : memref<16x64xf32, #tpu.memory_space<vmem>>, vector<16x64xf32>
    %c0_1 = arith.constant 0 : index
    %c0_2 = arith.constant 0 : index
    %1 = vector.load %arg1[%c0_1, %c0_2] : memref<16x64xf32, #tpu.memory_space<vmem>>, vector<16x64xf32>
    %c0_3 = arith.constant 0 : index
    %c0_4 = arith.constant 0 : index
    %2 = vector.load %arg2[%c0_3, %c0_4] : memref<64x512xf32, #tpu.memory_space<vmem>>, vector<64x512xf32>
    %cst = arith.constant dense<0.000000e+00> : vector<16x512xf32>
    %3 = tpu.matmul %1, %2, %cst {dimension_numbers = #tpu.dot_dimension_numbers<[1], [0], [0], [1], [0, 0, 1, 1], [], []>} : vector<16x64xf32>, vector<64x512xf32>, vector<16x512xf32> -> vector<16x512xf32>
    %c0_5 = arith.constant 0 : index
    %c0_6 = arith.constant 0 : index
    %4 = vector.load %arg3[%c0_5, %c0_6] : memref<1x512xf32, #tpu.memory_space<vmem>>, vector<1x512xf32>
    %5 = vector.broadcast %4 : vector<1x512xf32> to vector<16x512xf32>
    %6 = arith.addf %3, %5 : vector<16x512xf32>
    %cst_7 = arith.constant 0.000000e+00 : f32
    %7 = vector.broadcast %cst_7 : f32 to vector<16x512xf32>
    %8 = arith.maximumf %6, %7 : vector<16x512xf32>
    %c0_8 = arith.constant 0 : index
    %c0_9 = arith.constant 0 : index
    %9 = vector.load %arg4[%c0_8, %c0_9] : memref<512x64xf32, #tpu.memory_space<vmem>>, vector<512x64xf32>
    %cst_10 = arith.constant dense<0.000000e+00> : vector<16x64xf32>
    %10 = tpu.matmul %8, %9, %cst_10 {dimension_numbers = #tpu.dot_dimension_numbers<[1], [0], [0], [1], [0, 0, 1, 1], [], []>} : vector<16x512xf32>, vector<512x64xf32>, vector<16x64xf32> -> vector<16x64xf32>
    %11 = arith.addf %0, %10 : vector<16x64xf32>
    %c0_11 = arith.constant 0 : index
    %c0_12 = arith.constant 0 : index
    %12 = vector.load %arg5[%c0_11, %c0_12] : memref<1x64xf32, #tpu.memory_space<vmem>>, vector<1x64xf32>
    %13 = vector.broadcast %12 : vector<1x64xf32> to vector<16x64xf32>
    %14 = arith.addf %11, %13 : vector<16x64xf32>
    %cst_13 = arith.constant dense<0.000000e+00> : vector<16xf32>
    %15 = vector.multi_reduction <add>, %14, %cst_13 [1] : vector<16x64xf32> to vector<16xf32>
    %16 = vector.shape_cast %15 : vector<16xf32> to vector<16x1xf32>
    %cst_14 = arith.constant 6.400000e+01 : f32
    %17 = vector.broadcast %cst_14 : f32 to vector<16x1xf32>
    %18 = arith.divf %16, %17 : vector<16x1xf32>
    %19 = vector.broadcast %18 : vector<16x1xf32> to vector<16x64xf32>
    %20 = arith.subf %14, %19 : vector<16x64xf32>
    %21 = arith.mulf %20, %20 : vector<16x64xf32>
    %cst_15 = arith.constant dense<0.000000e+00> : vector<16xf32>
    %22 = vector.multi_reduction <add>, %21, %cst_15 [1] : vector<16x64xf32> to vector<16xf32>
    %23 = vector.shape_cast %22 : vector<16xf32> to vector<16x1xf32>
    %cst_16 = arith.constant 6.400000e+01 : f32
    %24 = vector.broadcast %cst_16 : f32 to vector<16x1xf32>
    %25 = arith.divf %23, %24 : vector<16x1xf32>
    %cst_17 = arith.constant 9.99999974E-6 : f32
    %26 = vector.broadcast %cst_17 : f32 to vector<16x1xf32>
    %27 = arith.addf %25, %26 : vector<16x1xf32>
    %28 = math.rsqrt %27 : vector<16x1xf32>
    %29 = vector.broadcast %28 : vector<16x1xf32> to vector<16x64xf32>
    %30 = arith.mulf %20, %29 : vector<16x64xf32>
    %c0_18 = arith.constant 0 : index
    %c0_19 = arith.constant 0 : index
    %31 = vector.load %arg6[%c0_18, %c0_19] : memref<1x64xf32, #tpu.memory_space<vmem>>, vector<1x64xf32>
    %32 = vector.broadcast %31 : vector<1x64xf32> to vector<16x64xf32>
    %33 = arith.mulf %30, %32 : vector<16x64xf32>
    %c0_20 = arith.constant 0 : index
    %c0_21 = arith.constant 0 : index
    %34 = vector.load %arg7[%c0_20, %c0_21] : memref<1x64xf32, #tpu.memory_space<vmem>>, vector<1x64xf32>
    %35 = vector.broadcast %34 : vector<1x64xf32> to vector<16x64xf32>
    %36 = arith.addf %33, %35 : vector<16x64xf32>
    %c0_22 = arith.constant 0 : index
    %c0_23 = arith.constant 0 : index
    %37 = vector.load %arg8[%c0_22, %c0_23] : memref<16x64xf32, #tpu.memory_space<vmem>>, vector<16x64xf32>
    tpu.vector_store %arg8[%c0_22, %c0_23], %36 {strides = array<i32>} : memref<16x64xf32, #tpu.memory_space<vmem>>, vector<16x64xf32>,
    return
  }
  func.func @transform_0(%arg0: i32) -> (i32, i32) {
    %c0_i32 = arith.constant 0 : i32
    %c0_i32_0 = arith.constant 0 : i32
    return %arg0, %c0_i32 : i32, i32
  }
  func.func @transform_1(%arg0: i32) -> (i32, i32) {
    %c0_i32 = arith.constant 0 : i32
    %c0_i32_0 = arith.constant 0 : i32
    %c0_i32_1 = arith.constant 0 : i32
    return %c0_i32, %c0_i32_0 : i32, i32
  }
  func.func @transform_2(%arg0: i32) -> (i32, i32) {
    %c0_i32 = arith.constant 0 : i32
    %c0_i32_0 = arith.constant 0 : i32
    %c0_i32_1 = arith.constant 0 : i32
    return %c0_i32, %c0_i32_0 : i32, i32
  }
  func.func @transform_3(%arg0: i32) -> (i32, i32) {
    %c0_i32 = arith.constant 0 : i32
    %c0_i32_0 = arith.constant 0 : i32
    %c0_i32_1 = arith.constant 0 : i32
    return %c0_i32, %c0_i32_0 : i32, i32
  }
  func.func @transform_4(%arg0: i32) -> (i32, i32) {
    %c0_i32 = arith.constant 0 : i32
    %c0_i32_0 = arith.constant 0 : i32
    %c0_i32_1 = arith.constant 0 : i32
    return %c0_i32, %c0_i32_0 : i32, i32
  }
  func.func @transform_5(%arg0: i32) -> (i32, i32) {
    %c0_i32 = arith.constant 0 : i32
    %c0_i32_0 = arith.constant 0 : i32
    %c0_i32_1 = arith.constant 0 : i32
    return %c0_i32, %c0_i32_0 : i32, i32
  }
  func.func @transform_6(%arg0: i32) -> (i32, i32) {
    %c0_i32 = arith.constant 0 : i32
    %c0_i32_0 = arith.constant 0 : i32
    %c0_i32_1 = arith.constant 0 : i32
    return %c0_i32, %c0_i32_0 : i32, i32
  }
  func.func @transform_7(%arg0: i32) -> (i32, i32) {
    %c0_i32 = arith.constant 0 : i32
    %c0_i32_0 = arith.constant 0 : i32
    return %arg0, %c0_i32 : i32, i32
  }
}

</mosaic_0001>

<llo_original>
// kernel: tpu_custom_call.1
$region0: #{tpu_custom_call.1}
  #allocation0 [shape = 'u32[]', space=smem, size = 0x4, offset = 0x4, fixed_abs, tag = 'smem constant byte address 0x4 - core index']
  #allocation1 [shape = 'u32[144,128]{1,0:T(1,128)}', space=vmem, size = 0x12000, scoped, tag = 'internal scratch']
  %s0 = inlined_call_operand.vmem [shape: f32[16,64], index: 0, kind: input, shape index: {}]
  %s1 = inlined_call_operand.vmem [shape: f32[64,512], index: 1, kind: input, shape index: {}]
  %s2 = inlined_call_operand.vmem [shape: f32[1,512], index: 2, kind: input, shape index: {}]
  %s3 = inlined_call_operand.vmem [shape: f32[512,64], index: 3, kind: input, shape index: {}]
  %s4 = inlined_call_operand.vmem [shape: f32[1,64], index: 4, kind: input, shape index: {}]
  %s5 = inlined_call_operand.vmem [shape: f32[1,64], index: 5, kind: input, shape index: {}]
  %s6 = inlined_call_operand.vmem [shape: f32[1,64], index: 6, kind: input, shape index: {}]
  %s7 = inlined_call_operand.hbm [shape: f32[16,64], index: 7, kind: output, shape index: {}]
  %s8 = sld [smem:[#allocation0]]
  $region38: #{tpu_custom_call.1} parent=0
    _
  %s10 = ssub.s32 1, %s8
  %s11 = scalar_select 0, %s10, %s8
  $region1: #{tpu_custom_call.1} parent=0
    #allocation2 [shape = 'u8[8192]{0}', space=vmem, size = 0x2000, scoped, tag = 'output window, operand 0, single buffered']
    #allocation3 [shape = 's32[1]{0}', space=sflag, size = 0x4, scoped, tag = 'scoped memory for tpu_custom_call.1']
    %12 = vsyncpa [#allocation3], 0
    // Predicated region
    $region2: #{tpu_custom_call.1} parent=1 // pred_check
      _
    $region3: #{tpu_custom_call.1} parent=1 // pred_check_branch
      %14 = sbr.rel (0) target = $region5
    $region4: #{tpu_custom_call.1} parent=1 // pred_region
      _
    $region5: #{tpu_custom_call.1} parent=1 // pred_fallthru
      _
    // Predicated region
    $region6: #{tpu_custom_call.1} parent=1 // pred_check
      _
    $region7: #{tpu_custom_call.1} parent=1 // pred_check_branch
      %16 = sbr.rel (0) target = $region9
    $region8: #{tpu_custom_call.1} parent=1 // pred_region
      _
    $region9: #{tpu_custom_call.1} parent=1 // pred_fallthru
      _
    // Predicated region
    $region10: #{tpu_custom_call.1} parent=1 // pred_check
      _
    $region11: #{tpu_custom_call.1} parent=1 // pred_check_branch
      %18 = sbr.rel (0) target = $region13
    $region12: #{tpu_custom_call.1} parent=1 // pred_region
      _
    $region13: #{tpu_custom_call.1} parent=1 // pred_fallthru
      _
    // Predicated region
    $region14: #{tpu_custom_call.1} parent=1 // pred_check
      _
    $region15: #{tpu_custom_call.1} parent=1 // pred_check_branch
      %20 = sbr.rel (0) target = $region17
    $region16: #{tpu_custom_call.1} parent=1 // pred_region
      _
    $region17: #{tpu_custom_call.1} parent=1 // pred_fallthru
      _
    // Predicated region
    $region18: #{tpu_custom_call.1} parent=1 // pred_check
      _
    $region19: #{tpu_custom_call.1} parent=1 // pred_check_branch
      %22 = sbr.rel (0) target = $region21
    $region20: #{tpu_custom_call.1} parent=1 // pred_region
      _
    $region21: #{tpu_custom_call.1} parent=1 // pred_fallthru
      _
    // Predicated region
    $region22: #{tpu_custom_call.1} parent=1 // pred_check
      _
    $region23: #{tpu_custom_call.1} parent=1 // pred_check_branch
      %24 = sbr.rel (0) target = $region25
    $region24: #{tpu_custom_call.1} parent=1 // pred_region
      _
    $region25: #{tpu_custom_call.1} parent=1 // pred_fallthru
      _
    // Predicated region
    $region26: #{tpu_custom_call.1} parent=1 // pred_check
      _
    $region27: #{tpu_custom_call.1} parent=1 // pred_check_branch
      %26 = sbr.rel (0) target = $region29
    $region28: #{tpu_custom_call.1} parent=1 // pred_region
      _
    $region29: #{tpu_custom_call.1} parent=1 // pred_fallthru
      _
    %v27 = vld [vmem:[%s0] sm:$0xff]
    %v28 = vld [vmem:[%s0 + $0x8] sm:$0xff]
    %v29 = vld [vmem:[%s1] sm:$0xff]
    %v30 = vld [vmem:[%s1 + $0x8] sm:$0xff]
    %v31 = vld [vmem:[%s1 + $0x10] sm:$0xff]
    %v32 = vld [vmem:[%s1 + $0x18] sm:$0xff]
    %v33 = vld [vmem:[%s1 + $0x20] sm:$0xff]
    %v34 = vld [vmem:[%s1 + $0x28] sm:$0xff]
    %v35 = vld [vmem:[%s1 + $0x30] sm:$0xff]
    %v36 = vld [vmem:[%s1 + $0x38] sm:$0xff]
    %v37 = vld [vmem:[%s1 + $0x40] sm:$0xff]
    %v38 = vld [vmem:[%s1 + $0x48] sm:$0xff]
    %v39 = vld [vmem:[%s1 + $0x50] sm:$0xff]
    %v40 = vld [vmem:[%s1 + $0x58] sm:$0xff]
    %v41 = vld [vmem:[%s1 + $0x60] sm:$0xff]
    %v42 = vld [vmem:[%s1 + $0x68] sm:$0xff]
    %v43 = vld [vmem:[%s1 + $0x70] sm:$0xff]
    %v44 = vld [vmem:[%s1 + $0x78] sm:$0xff]
    %v45 = vld [vmem:[%s1 + $0x80] sm:$0xff]
    %v46 = vld [vmem:[%s1 + $0x88] sm:$0xff]
    %v47 = vld [vmem:[%s1 + $0x90] sm:$0xff]
    %v48 = vld [vmem:[%s1 + $0x98] sm:$0xff]
    %v49 = vld [vmem:[%s1 + $0xa0] sm:$0xff]
    %v50 = vld [vmem:[%s1 + $0xa8] sm:$0xff]
    %v51 = vld [vmem:[%s1 + $0xb0] sm:$0xff]
    %v52 = vld [vmem:[%s1 + $0xb8] sm:$0xff]
    %v53 = vld [vmem:[%s1 + $0xc0] sm:$0xff]
    %v54 = vld [vmem:[%s1 + $0xc8] sm:$0xff]
    %v55 = vld [vmem:[%s1 + $0xd0] sm:$0xff]
    %v56 = vld [vmem:[%s1 + $0xd8] sm:$0xff]
    %v57 = vld [vmem:[%s1 + $0xe0] sm:$0xff]
    %v58 = vld [vmem:[%s1 + $0xe8] sm:$0xff]
    %v59 = vld [vmem:[%s1 + $0xf0] sm:$0xff]
    %v60 = vld [vmem:[%s1 + $0xf8] sm:$0xff]
    %v61 = vld [vmem:[%s2] sm:$0xf]
    %v63 = vlaneseq
    %v64 = vshrl.u32 %v63, 7
    %v65 = vsub.s32 0, %v64
    %v66 = vrot.slane %v61, %v65
    %v67 = vlaneseq
    %v68 = vshrl.u32 %v67, 7
    %v69 = vsub.s32 1, %v68
    %v70 = vrot.slane %v61, %v69
    %v71 = vlaneseq
    %v72 = vshrl.u32 %v71, 7
    %v73 = vsub.s32 2, %v72
    %v74 = vrot.slane %v61, %v73
    %v75 = vlaneseq
    %v76 = vshrl.u32 %v75, 7
    %v77 = vsub.s32 3, %v76
    %v78 = vrot.slane %v61, %v77
    %vm83 = vcmask 523264
    %v85 = vsel %vm83, %v27, 0
    %v88 = vsel %vm83, %v28, 0
    %90 = vmatprep.subr.mxu0 0.0
    %91 = vmatpush1.msra.mxu0 0.0
    %92 = vmatprep.subr.mxu0 0.0
    %93 = vmatpush1.msra.mxu0 0.0
    %94 = vmatprep.subr.mxu0 0.0
    %95 = vmatpush1.msra.mxu0 0.0
    %96 = vmatprep.subr.mxu0 0.0
    %97 = vmatpush1.msra.mxu0 0.0
    %98 = vmatprep.subr.mxu0 0.0
    %99 = vmatpush1.msra.mxu0 0.0
    %100 = vmatprep.subr.mxu0 0.0
    %101 = vmatpush1.msra.mxu0 0.0
    %102 = vmatprep.subr.mxu0 0.0
    %103 = vmatpush1.msra.mxu0 0.0
    %104 = vmatprep.subr.mxu0 0.0
    %105 = vmatpush1.msra.mxu0 0.0
    %106 = vmatprep.subr.mxu0 %v58
    %107 = vmatpush1.msra.mxu0 %v57
    %108 = vmatprep.subr.mxu0 %v54
    %109 = vmatpush1.msra.mxu0 %v53
    %110 = vmatprep.subr.mxu0 %v50
    %111 = vmatpush1.msra.mxu0 %v49
    %112 = vmatprep.subr.mxu0 %v46
    %113 = vmatpush1.msra.mxu0 %v45
    %114 = vmatprep.subr.mxu0 %v42
    %115 = vmatpush1.msra.mxu0 %v41
    %116 = vmatprep.subr.mxu0 %v38
    %117 = vmatpush1.msra.mxu0 %v37
    %118 = vmatprep.subr.mxu0 %v34
    %119 = vmatpush1.msra.mxu0 %v33
    %120 = vmatprep.subr.mxu0 %v30
    %121 = vmatpush1.msra.mxu0 %v29
    %122 = vmatprep.subr.mxu0 0.0
    %123 = vmatpush2.msra.mxu0 0.0
    %124 = vmatprep.subr.mxu0 0.0
    %125 = vmatpush2.msra.mxu0 0.0
    %126 = vmatprep.subr.mxu0 0.0
    %127 = vmatpush2.msra.mxu0 0.0
    %128 = vmatprep.subr.mxu0 0.0
    %129 = vmatpush2.msra.mxu0 0.0
    %130 = vmatprep.subr.mxu0 0.0
    %131 = vmatpush2.msra.mxu0 0.0
    %132 = vmatprep.subr.mxu0 0.0
    %133 = vmatpush2.msra.mxu0 0.0
    %134 = vmatprep.subr.mxu0 0.0
    %135 = vmatpush2.msra.mxu0 0.0
    %136 = vmatprep.subr.mxu0 0.0
    %137 = vmatpush2.msra.mxu0 0.0
    %138 = vmatprep.subr.mxu0 0.0
    %139 = vmatpush2.msra.mxu0 0.0
    %140 = vmatprep.subr.mxu0 0.0
    %141 = vmatpush2.msra.mxu0 0.0
    %142 = vmatprep.subr.mxu0 0.0
    %143 = vmatpush2.msra.mxu0 0.0
    %144 = vmatprep.subr.mxu0 0.0
    %145 = vmatpush2.msra.mxu0 0.0
    %146 = vmatprep.subr.mxu0 0.0
    %147 = vmatpush2.msra.mxu0 0.0
    %148 = vmatprep.subr.mxu0 0.0
    %149 = vmatpush2.msra.mxu0 0.0
    %150 = vmatprep.subr.mxu0 0.0
    %151 = vmatpush2.msra.mxu0 0.0
    %152 = vmatprep.subr.mxu0 0.0
    %153 = vmatpush2.msra.mxu0 0.0
    %154 = vmatprep.mubr.f32.mxu0 0.0
    %155 = vmatmul.mubr.f32.gmra.mxu0 %v85
    %v156 = vpop.f32.mrf.mxu0
    %v157 = vadd.f32 %v66, %v156
    %v158 = vpop.f32.mrf.mxu0
    %v159 = vadd.f32 %v70, %v158
    %160 = vmatprep.mubr.f32.mxu0 0.0
    %161 = vmatmul.mubr.f32.gmra.mxu0 %v88
    %v162 = vpop.f32.mrf.mxu0
    %v163 = vadd.f32 %v66, %v162
    %v164 = vpop.f32.mrf.mxu0
    %v165 = vadd.f32 %v70, %v164
    %166 = vdwg.mxu0
    %167 = vmatprep.subr.mxu0 0.0
    %168 = vmatpush1.msra.mxu0 0.0
    %169 = vmatprep.subr.mxu0 0.0
    %170 = vmatpush1.msra.mxu0 0.0
    %171 = vmatprep.subr.mxu0 0.0
    %172 = vmatpush1.msra.mxu0 0.0
    %173 = vmatprep.subr.mxu0 0.0
    %174 = vmatpush1.msra.mxu0 0.0
    %175 = vmatprep.subr.mxu0 0.0
    %176 = vmatpush1.msra.mxu0 0.0
    %177 = vmatprep.subr.mxu0 0.0
    %178 = vmatpush1.msra.mxu0 0.0
    %179 = vmatprep.subr.mxu0 0.0
    %180 = vmatpush1.msra.mxu0 0.0
    %181 = vmatprep.subr.mxu0 0.0
    %182 = vmatpush1.msra.mxu0 0.0
    %183 = vmatprep.subr.mxu0 %v60
    %184 = vmatpush1.msra.mxu0 %v59
    %185 = vmatprep.subr.mxu0 %v56
    %186 = vmatpush1.msra.mxu0 %v55
    %187 = vmatprep.subr.mxu0 %v52
    %188 = vmatpush1.msra.mxu0 %v51
    %189 = vmatprep.subr.mxu0 %v48
    %190 = vmatpush1.msra.mxu0 %v47
    %191 = vmatprep.subr.mxu0 %v44
    %192 = vmatpush1.msra.mxu0 %v43
    %193 = vmatprep.subr.mxu0 %v40
    %194 = vmatpush1.msra.mxu0 %v39
    %195 = vmatprep.subr.mxu0 %v36
    %196 = vmatpush1.msra.mxu0 %v35
    %197 = vmatprep.subr.mxu0 %v32
    %198 = vmatpush1.msra.mxu0 %v31
    %199 = vmatprep.subr.mxu0 0.0
    %200 = vmatpush2.msra.mxu0 0.0
    %201 = vmatprep.subr.mxu0 0.0
    %202 = vmatpush2.msra.mxu0 0.0
    %203 = vmatprep.subr.mxu0 0.0
    %204 = vmatpush2.msra.mxu0 0.0
    %205 = vmatprep.subr.mxu0 0.0
    %206 = vmatpush2.msra.mxu0 0.0
    %207 = vmatprep.subr.mxu0 0.0
    %208 = vmatpush2.msra.mxu0 0.0
    %209 = vmatprep.subr.mxu0 0.0
    %210 = vmatpush2.msra.mxu0 0.0
    %211 = vmatprep.subr.mxu0 0.0
    %212 = vmatpush2.msra.mxu0 0.0
    %213 = vmatprep.subr.mxu0 0.0
    %214 = vmatpush2.msra.mxu0 0.0
    %215 = vmatprep.subr.mxu0 0.0
    %216 = vmatpush2.msra.mxu0 0.0
    %217 = vmatprep.subr.mxu0 0.0
    %218 = vmatpush2.msra.mxu0 0.0
    %219 = vmatprep.subr.mxu0 0.0
    %220 = vmatpush2.msra.mxu0 0.0
    %221 = vmatprep.subr.mxu0 0.0
    %222 = vmatpush2.msra.mxu0 0.0
    %223 = vmatprep.subr.mxu0 0.0
    %224 = vmatpush2.msra.mxu0 0.0
    %225 = vmatprep.subr.mxu0 0.0
    %226 = vmatpush2.msra.mxu0 0.0
    %227 = vmatprep.subr.mxu0 0.0
    %228 = vmatpush2.msra.mxu0 0.0
    %229 = vmatprep.subr.mxu0 0.0
    %230 = vmatpush2.msra.mxu0 0.0
    %231 = vmatprep.mubr.f32.mxu0 0.0
    %232 = vmatmul.mubr.f32.gmra.mxu0 %v85
    %v233 = vpop.f32.mrf.mxu0
    %v234 = vadd.f32 %v74, %v233
    %v235 = vpop.f32.mrf.mxu0
    %v236 = vadd.f32 %v78, %v235
    %237 = vmatprep.mubr.f32.mxu0 0.0
    %238 = vmatmul.mubr.f32.gmra.mxu0 %v88
    %v239 = vpop.f32.mrf.mxu0
    %v240 = vadd.f32 %v74, %v239
    %v241 = vpop.f32.mrf.mxu0
    %v242 = vadd.f32 %v78, %v241
    %243 = vdwg.mxu0
    %v244 = vmax.f32 %v157, 0.0
    %v245 = vmax.f32 %v159, 0.0
    %v246 = vmax.f32 %v234, 0.0
    %v247 = vmax.f32 %v236, 0.0
    %v248 = vmax.f32 %v163, 0.0
    %v249 = vmax.f32 %v165, 0.0
    %v250 = vmax.f32 %v240, 0.0
    %v251 = vmax.f32 %v242, 0.0
    %v252 = vld [vmem:[%s3] sm:$0xff]
    %v253 = vld [vmem:[%s3 + $0x8] sm:$0xff]
    %v254 = vld [vmem:[%s3 + $0x10] sm:$0xff]
    %v255 = vld [vmem:[%s3 + $0x18] sm:$0xff]
    %v256 = vld [vmem:[%s3 + $0x20] sm:$0xff]
    %v257 = vld [vmem:[%s3 + $0x28] sm:$0xff]
    %v258 = vld [vmem:[%s3 + $0x30] sm:$0xff]
    %v259 = vld [vmem:[%s3 + $0x38] sm:$0xff]
    %v260 = vld [vmem:[%s3 + $0x40] sm:$0xff]
    %v261 = vld [vmem:[%s3 + $0x48] sm:$0xff]
    %v262 = vld [vmem:[%s3 + $0x50] sm:$0xff]
    %v263 = vld [vmem:[%s3 + $0x58] sm:$0xff]
    %v264 = vld [vmem:[%s3 + $0x60] sm:$0xff]
    %v265 = vld [vmem:[%s3 + $0x68] sm:$0xff]
    %v266 = vld [vmem:[%s3 + $0x70] sm:$0xff]
    %v267 = vld [vmem:[%s3 + $0x78] sm:$0xff]
    %v268 = vld [vmem:[%s3 + $0x80] sm:$0xff]
    %v269 = vld [vmem:[%s3 + $0x88] sm:$0xff]
    %v270 = vld [vmem:[%s3 + $0x90] sm:$0xff]
    %v271 = vld [vmem:[%s3 + $0x98] sm:$0xff]
    %v272 = vld [vmem:[%s3 + $0xa0] sm:$0xff]
    %v273 = vld [vmem:[%s3 + $0xa8] sm:$0xff]
    %v274 = vld [vmem:[%s3 + $0xb0] sm:$0xff]
    %v275 = vld [vmem:[%s3 + $0xb8] sm:$0xff]
    %v276 = vld [vmem:[%s3 + $0xc0] sm:$0xff]
    %v277 = vld [vmem:[%s3 + $0xc8] sm:$0xff]
    %v278 = vld [vmem:[%s3 + $0xd0] sm:$0xff]
    %v279 = vld [vmem:[%s3 + $0xd8] sm:$0xff]
    %v280 = vld [vmem:[%s3 + $0xe0] sm:$0xff]
    %v281 = vld [vmem:[%s3 + $0xe8] sm:$0xff]
    %v282 = vld [vmem:[%s3 + $0xf0] sm:$0xff]
    %v283 = vld [vmem:[%s3 + $0xf8] sm:$0xff]
    %v284 = vld [vmem:[%s3 + $0x100] sm:$0xff]
    %v285 = vld [vmem:[%s3 + $0x108] sm:$0xff]
    %v286 = vld [vmem:[%s3 + $0x110] sm:$0xff]
    %v287 = vld [vmem:[%s3 + $0x118] sm:$0xff]
    %v288 = vld [vmem:[%s3 + $0x120] sm:$0xff]
    %v289 = vld [vmem:[%s3 + $0x128] sm:$0xff]
    %v290 = vld [vmem:[%s3 + $0x130] sm:$0xff]
    %v291 = vld [vmem:[%s3 + $0x138] sm:$0xff]
    %v292 = vld [vmem:[%s3 + $0x140] sm:$0xff]
    %v293 = vld [vmem:[%s3 + $0x148] sm:$0xff]
    %v294 = vld [vmem:[%s3 + $0x150] sm:$0xff]
    %v295 = vld [vmem:[%s3 + $0x158] sm:$0xff]
    %v296 = vld [vmem:[%s3 + $0x160] sm:$0xff]
    %v297 = vld [vmem:[%s3 + $0x168] sm:$0xff]
    %v298 = vld [vmem:[%s3 + $0x170] sm:$0xff]
    %v299 = vld [vmem:[%s3 + $0x178] sm:$0xff]
    %v300 = vld [vmem:[%s3 + $0x180] sm:$0xff]
    %v301 = vld [vmem:[%s3 + $0x188] sm:$0xff]
    %v302 = vld [vmem:[%s3 + $0x190] sm:$0xff]
    %v303 = vld [vmem:[%s3 + $0x198] sm:$0xff]
    %v304 = vld [vmem:[%s3 + $0x1a0] sm:$0xff]
    %v305 = vld [vmem:[%s3 + $0x1a8] sm:$0xff]
    %v306 = vld [vmem:[%s3 + $0x1b0] sm:$0xff]
    %v307 = vld [vmem:[%s3 + $0x1b8] sm:$0xff]
    %v308 = vld [vmem:[%s3 + $0x1c0] sm:$0xff]
    %v309 = vld [vmem:[%s3 + $0x1c8] sm:$0xff]
    %v310 = vld [vmem:[%s3 + $0x1d0] sm:$0xff]
    %v311 = vld [vmem:[%s3 + $0x1d8] sm:$0xff]
    %v312 = vld [vmem:[%s3 + $0x1e0] sm:$0xff]
    %v313 = vld [vmem:[%s3 + $0x1e8] sm:$0xff]
    %v314 = vld [vmem:[%s3 + $0x1f0] sm:$0xff]
    %v315 = vld [vmem:[%s3 + $0x1f8] sm:$0xff]
    %316 = vmatprep.subr.mxu0 0.0
    %317 = vmatpush1.msra.mxu0 %v267
    %318 = vmatprep.subr.mxu0 0.0
    %319 = vmatpush1.msra.mxu0 %v266
    %320 = vmatprep.subr.mxu0 0.0
    %321 = vmatpush1.msra.mxu0 %v265
    %322 = vmatprep.subr.mxu0 0.0
    %323 = vmatpush1.msra.mxu0 %v264
    %324 = vmatprep.subr.mxu0 0.0
    %325 = vmatpush1.msra.mxu0 %v263
    %326 = vmatprep.subr.mxu0 0.0
    %327 = vmatpush1.msra.mxu0 %v262
    %328 = vmatprep.subr.mxu0 0.0
    %329 = vmatpush1.msra.mxu0 %v261
    %330 = vmatprep.subr.mxu0 0.0
    %331 = vmatpush1.msra.mxu0 %v260
    %332 = vmatprep.subr.mxu0 0.0
    %333 = vmatpush1.msra.mxu0 %v259
    %334 = vmatprep.subr.mxu0 0.0
    %335 = vmatpush1.msra.mxu0 %v258
    %336 = vmatprep.subr.mxu0 0.0
    %337 = vmatpush1.msra.mxu0 %v257
    %338 = vmatprep.subr.mxu0 0.0
    %339 = vmatpush1.msra.mxu0 %v256
    %340 = vmatprep.subr.mxu0 0.0
    %341 = vmatpush1.msra.mxu0 %v255
    %342 = vmatprep.subr.mxu0 0.0
    %343 = vmatpush1.msra.mxu0 %v254
    %344 = vmatprep.subr.mxu0 0.0
    %345 = vmatpush1.msra.mxu0 %v253
    %346 = vmatprep.subr.mxu0 0.0
    %347 = vmatpush1.msra.mxu0 %v252
    %348 = vmatprep.subr.mxu0 0.0
    %349 = vmatpush2.msra.mxu0 %v283
    %350 = vmatprep.subr.mxu0 0.0
    %351 = vmatpush2.msra.mxu0 %v282
    %352 = vmatprep.subr.mxu0 0.0
    %353 = vmatpush2.msra.mxu0 %v281
    %354 = vmatprep.subr.mxu0 0.0
    %355 = vmatpush2.msra.mxu0 %v280
    %356 = vmatprep.subr.mxu0 0.0
    %357 = vmatpush2.msra.mxu0 %v279
    %358 = vmatprep.subr.mxu0 0.0
    %359 = vmatpush2.msra.mxu0 %v278
    %360 = vmatprep.subr.mxu0 0.0
    %361 = vmatpush2.msra.mxu0 %v277
    %362 = vmatprep.subr.mxu0 0.0
    %363 = vmatpush2.msra.mxu0 %v276
    %364 = vmatprep.subr.mxu0 0.0
    %365 = vmatpush2.msra.mxu0 %v275
    %366 = vmatprep.subr.mxu0 0.0
    %367 = vmatpush2.msra.mxu0 %v274
    %368 = vmatprep.subr.mxu0 0.0
    %369 = vmatpush2.msra.mxu0 %v273
    %370 = vmatprep.subr.mxu0 0.0
    %371 = vmatpush2.msra.mxu0 %v272
    %372 = vmatprep.subr.mxu0 0.0
    %373 = vmatpush2.msra.mxu0 %v271
    %374 = vmatprep.subr.mxu0 0.0
    %375 = vmatpush2.msra.mxu0 %v270
    %376 = vmatprep.subr.mxu0 0.0
    %377 = vmatpush2.msra.mxu0 %v269
    %378 = vmatprep.subr.mxu0 0.0
    %379 = vmatpush2.msra.mxu0 %v268
    %380 = vmatprep.mubr.f32.mxu0 %v245
    %381 = vmatmul.mubr.f32.gmra.mxu0 %v244
    %v382 = vpop.f32.mrf.mxu0
    %v383 = vadd.f32 0.0, %v382
    %v384 = vpop.f32.mrf.mxu0
    %385 = vmatprep.mubr.f32.mxu0 %v249
    %386 = vmatmul.mubr.f32.gmra.mxu0 %v248
    %v387 = vpop.f32.mrf.mxu0
    %v388 = vadd.f32 0.0, %v387
    %v389 = vpop.f32.mrf.mxu0
    %390 = vdwg.mxu0
    %391 = vmatprep.subr.mxu0 0.0
    %392 = vmatpush1.msra.mxu0 %v299
    %393 = vmatprep.subr.mxu0 0.0
    %394 = vmatpush1.msra.mxu0 %v298
    %395 = vmatprep.subr.mxu0 0.0
    %396 = vmatpush1.msra.mxu0 %v297
    %397 = vmatprep.subr.mxu0 0.0
    %398 = vmatpush1.msra.mxu0 %v296
    %399 = vmatprep.subr.mxu0 0.0
    %400 = vmatpush1.msra.mxu0 %v295
    %401 = vmatprep.subr.mxu0 0.0
    %402 = vmatpush1.msra.mxu0 %v294
    %403 = vmatprep.subr.mxu0 0.0
    %404 = vmatpush1.msra.mxu0 %v293
    %405 = vmatprep.subr.mxu0 0.0
    %406 = vmatpush1.msra.mxu0 %v292
    %407 = vmatprep.subr.mxu0 0.0
    %408 = vmatpush1.msra.mxu0 %v291
    %409 = vmatprep.subr.mxu0 0.0
    %410 = vmatpush1.msra.mxu0 %v290
    %411 = vmatprep.subr.mxu0 0.0
    %412 = vmatpush1.msra.mxu0 %v289
    %413 = vmatprep.subr.mxu0 0.0
    %414 = vmatpush1.msra.mxu0 %v288
    %415 = vmatprep.subr.mxu0 0.0
    %416 = vmatpush1.msra.mxu0 %v287
    %417 = vmatprep.subr.mxu0 0.0
    %418 = vmatpush1.msra.mxu0 %v286
    %419 = vmatprep.subr.mxu0 0.0
    %420 = vmatpush1.msra.mxu0 %v285
    %421 = vmatprep.subr.mxu0 0.0
    %422 = vmatpush1.msra.mxu0 %v284
    %423 = vmatprep.subr.mxu0 0.0
    %424 = vmatpush2.msra.mxu0 %v315
    %425 = vmatprep.subr.mxu0 0.0
    %426 = vmatpush2.msra.mxu0 %v314
    %427 = vmatprep.subr.mxu0 0.0
    %428 = vmatpush2.msra.mxu0 %v313
    %429 = vmatprep.subr.mxu0 0.0
    %430 = vmatpush2.msra.mxu0 %v312
    %431 = vmatprep.subr.mxu0 0.0
    %432 = vmatpush2.msra.mxu0 %v311
    %433 = vmatprep.subr.mxu0 0.0
    %434 = vmatpush2.msra.mxu0 %v310
    %435 = vmatprep.subr.mxu0 0.0
    %436 = vmatpush2.msra.mxu0 %v309
    %437 = vmatprep.subr.mxu0 0.0
    %438 = vmatpush2.msra.mxu0 %v308
    %439 = vmatprep.subr.mxu0 0.0
    %440 = vmatpush2.msra.mxu0 %v307
    %441 = vmatprep.subr.mxu0 0.0
    %442 = vmatpush2.msra.mxu0 %v306
    %443 = vmatprep.subr.mxu0 0.0
    %444 = vmatpush2.msra.mxu0 %v305
    %445 = vmatprep.subr.mxu0 0.0
    %446 = vmatpush2.msra.mxu0 %v304
    %447 = vmatprep.subr.mxu0 0.0
    %448 = vmatpush2.msra.mxu0 %v303
    %449 = vmatprep.subr.mxu0 0.0
    %450 = vmatpush2.msra.mxu0 %v302
    %451 = vmatprep.subr.mxu0 0.0
    %452 = vmatpush2.msra.mxu0 %v301
    %453 = vmatprep.subr.mxu0 0.0
    %454 = vmatpush2.msra.mxu0 %v300
    %455 = vmatprep.mubr.f32.mxu0 %v247
    %456 = vmatmul.mubr.f32.gmra.mxu0 %v246
    %v457 = vpop.f32.mrf.mxu0
    %v458 = vadd.f32 %v383, %v457
    %v459 = vpop.f32.mrf.mxu0
    %460 = vmatprep.mubr.f32.mxu0 %v251
    %461 = vmatmul.mubr.f32.gmra.mxu0 %v250
    %v462 = vpop.f32.mrf.mxu0
    %v463 = vadd.f32 %v388, %v462
    %v464 = vpop.f32.mrf.mxu0
    %465 = vdwg.mxu0
    %v466 = vadd.f32 %v27, %v458
    %v467 = vadd.f32 %v28, %v463
    %v468 = vld [vmem:[%s4] sm:$0x1]
    %v470 = vlaneseq
    %v471 = vshrl.u32 %v470, 7
    %v472 = vsub.s32 0, %v471
    %v473 = vrot.slane %v468, %v472
    %v475 = vadd.f32 %v466, %v473
    %v476 = vadd.f32 %v467, %v473
    %v477 = vsel %vm83, %v475, 0.0
    %478 = vadd.xlane.f32.xlu0 %v477
    %v479 = vpop.xlane.xlu0 %478
    %v480 = vsel %vm83, %v476, 0.0
    %481 = vadd.xlane.f32.xlu0 %v480
    %v482 = vpop.xlane.xlu0 %481
    %v483 = vrcp.pop 64.0
    %v484 = vmul.f32 %v479, %v483
    %v485 = vmul.f32 %v482, %v483
    %v486 = vsub.f32 %v475, %v484
    %v487 = vsub.f32 %v476, %v485
    %v488 = vmul.f32 %v486, %v486
    %v489 = vmul.f32 %v487, %v487
    %v490 = vsel %vm83, %v488, 0.0
    %491 = vadd.xlane.f32.xlu0 %v490
    %v492 = vpop.xlane.xlu0 %491
    %v493 = vsel %vm83, %v489, 0.0
    %494 = vadd.xlane.f32.xlu0 %v493
    %v495 = vpop.xlane.xlu0 %494
    %v496 = vmul.f32 %v492, %v483
    %v497 = vmul.f32 %v495, %v483
    %v498 = vadd.f32 %v496, 1e-05
    %v499 = vadd.f32 %v497, 1e-05
    %v500 = vrsqrt.pop %v498
    %v501 = vrsqrt.pop %v499
    %v502 = vmul.f32 %v486, %v500
    %v503 = vmul.f32 %v487, %v501
    %v504 = vld [vmem:[%s5] sm:$0x1]
    %v506 = vlaneseq
    %v507 = vshrl.u32 %v506, 7
    %v508 = vsub.s32 0, %v507
    %v509 = vrot.slane %v504, %v508
    %v511 = vmul.f32 %v502, %v509
    %v512 = vmul.f32 %v503, %v509
    %v513 = vld [vmem:[%s6] sm:$0x1]
    %v515 = vlaneseq
    %v516 = vshrl.u32 %v515, 7
    %v517 = vsub.s32 0, %v516
    %v518 = vrot.slane %v513, %v517
    %v520 = vadd.f32 %v511, %v518
    %v521 = vadd.f32 %v512, %v518
    %522 = vst.msk [vmem:[#allocation2] sm:$0xff] %vm83, %v520
    %523 = vst.msk [vmem:[#allocation2 + $0x8] sm:$0xff] %vm83, %v521
    // Predicated region
    $region30: #{tpu_custom_call.1} parent=1 // pred_check
      _
    $region31: #{tpu_custom_call.1} parent=1 // pred_check_branch
      %525 = sbr.rel (0) target = $region33
    $region32: #{tpu_custom_call.1} parent=1 // pred_region
      %s527 = ssub.s32 256, 256
      %528 = vsyncadd [#allocation3], %s527
      %s529 = sshll.u32 [#allocation2], 4
      %s530 = int_to_ptr.vmem [resolvable:$true] %s529
      %535 = dma.vmem_to_hbm [thread:$0]  %s530, 256, %s7, [#allocation3], 128, 128, 8
    $region33: #{tpu_custom_call.1} parent=1 // pred_fallthru
      _
    // Predicated region
    $region34: #{tpu_custom_call.1} parent=1 // pred_check
      _
    $region35: #{tpu_custom_call.1} parent=1 // pred_check_branch
      %537 = sbr.rel (0) target = $region37
    $region36: #{tpu_custom_call.1} parent=1 // pred_region
      %538 = dma.done [#allocation3], 256
    $region37: #{tpu_custom_call.1} parent=1 // pred_fallthru
      _
    %539 = vsyncpa [#allocation3], 1

</llo_original>
